<compile_context>
chip_gen: v7x
topology: tpu7x:2x2x1
jax: 0.10.0
libtpu: 0.0.40
codegen_flags: <defaults>
</compile_context>

<pallas_src>
import jax
import jax.numpy as jnp
from jax.experimental import pallas as pl
from jax.experimental.pallas import tpu as pltpu


_LANE = 128
_TARGET_BLOCK_BYTES = 2 * 1024 * 1024  # ~2 MiB per block (see header comment)


def _mask_kernel(x_ref, o_ref):
    x = x_ref[...]
    # torch.where(x == 0, x, 255): keep zeros, every nonzero pixel -> 255.
    # jnp.array(255).astype(...) wraps for signed narrow dtypes instead of
    # raising; intended label-map dtypes are float32 / uint8 / int32.
    # TODO(synk): confirm desired semantics for int8 inputs (255 wraps to -1).
    o_ref[...] = jnp.where(x == 0, x, jnp.array(255).astype(x.dtype))


def _native_sublane(itemsize: int) -> int:
    # One 32-bit sublane word packs (4 // itemsize) elements; native
    # second-minor tile is 8 * packing rows (8 for f32/i32, 16 for bf16,
    # 32 for uint8/int8).
    packing = max(1, 4 // max(1, itemsize))
    return 8 * packing


def _round_down_mult(v: int, m: int) -> int:
    return max(m, (v // m) * m)


def _pick_2d_view(shape, itemsize):
    """Pick a copy-free (rows, cols) view of the flattened array + row tile."""
    total = 1
    for d in shape:
        total *= int(d)
    sub = _native_sublane(itemsize)

    rows = cols = None
    if total % (sub * _LANE) == 0:
        # Lane-dense fast path: widest cols (bigger contiguous DMA descriptors,
        # unmasked full-lane vst) that keeps rows a multiple of the native
        # sublane tile.
        for c in (2048, 1024, 512, 256, 128):
            if total % c == 0 and (total // c) % sub == 0:
                rows, cols = total // c, c
                break
    if rows is None:
        # Ragged fallback: natural view; block last dim == full last dim
        # (always a legal block shape), no padding copies.
        if len(shape) >= 2:
            cols = int(shape[-1])
            rows = total // cols
        else:
            rows, cols = 1, max(1, total)

    if rows <= sub:
        tile_rows = rows  # single full-rows block (equal-to-full-dim is legal)
    else:
        target_rows = max(sub, _TARGET_BLOCK_BYTES // max(1, cols * itemsize))
        tile_rows = _round_down_mult(min(target_rows, rows), sub)
        # Keep >= 2 grid steps when possible so both v7x TensorCores work.
        if pl.cdiv(rows, tile_rows) < 2 and rows >= 2 * sub:
            tile_rows = _round_down_mult(pl.cdiv(rows, 2), sub)
    return rows, cols, tile_rows


def mask_from_label_map(x: jnp.ndarray) -> jnp.ndarray:
    """Elementwise where(x == 0, x, 255). Works for any shape/dtype (NCHW expected)."""
    orig_shape = x.shape
    itemsize = jnp.dtype(x.dtype).itemsize
    rows, cols, tile_rows = _pick_2d_view(orig_shape, itemsize)

    x2d = x.reshape(rows, cols)  # metadata-only reshape, no HBM copy

    grid = (pl.cdiv(rows, tile_rows),)  # cdiv: no tail-drop; partial block masked
    out2d = pl.pallas_call(
        _mask_kernel,
        out_shape=jax.ShapeDtypeStruct((rows, cols), x.dtype),
        grid_spec=pltpu.PrefetchScalarGridSpec(
            num_scalar_prefetch=0,
            grid=grid,
            in_specs=[pl.BlockSpec((tile_rows, cols), lambda i: (i, 0))],
            out_specs=pl.BlockSpec((tile_rows, cols), lambda i: (i, 0)),
        ),
        compiler_params=pltpu.CompilerParams(
            dimension_semantics=("parallel",)),
        input_output_aliases={0: 0},  # reuse input HBM buffer when donated
    )(x2d)

    return out2d.reshape(orig_shape)


if __name__ == "__main__":
    key = jax.random.PRNGKey(0)
    k1, k2 = jax.random.split(key)

    # Grayscale label map, NCHW: batch=2, channels=1, spatial=16x16, stored as
    # float32 (as the dataset loader produces).  Exercises the ragged
    # natural-view path.
    x_f32 = jax.random.randint(k1, (2, 1, 16, 16), 0, 5).astype(jnp.float32)
    y = jax.block_until_ready(mask_from_label_map(x_f32))
    ref = jnp.where(x_f32 == 0, x_f32, jnp.asarray(255, x_f32.dtype))
    assert y.shape == x_f32.shape and y.dtype == x_f32.dtype
    assert bool(jnp.all(y == ref))

    # Native narrow-dtype (uint8) label map at a size that hits the lane-dense
    # fast path (4x less HBM traffic than the float32 cast).
    x_u8 = jax.random.randint(k2, (2, 1, 128, 128), 0, 5, dtype=jnp.int32).astype(jnp.uint8)
    y8 = jax.block_until_ready(mask_from_label_map(x_u8))
    ref8 = jnp.where(x_u8 == 0, x_u8, jnp.asarray(255, jnp.uint8))
    assert y8.shape == x_u8.shape and y8.dtype == x_u8.dtype
    assert bool(jnp.all(y8 == ref8))

    print("KERNEL_OK")
</pallas_src>

<mosaic_0001>
module attributes {stable_mosaic.version = 11 : i64} {
  func.func @_mask_kernel(%arg0: i32, %arg1: memref<16x16xf32, #tpu.memory_space<vmem>>, %arg2: memref<16x16xf32, #tpu.memory_space<vmem>>) attributes {dimension_semantics = [#tpu.dimension_semantics<parallel>], iteration_bounds = array<i64: 2>, scalar_prefetch = 0 : i64, scratch_operands = 0 : i64, tpu.core_type = #tpu.core_type<tc>, window_params = [{transform_indices = @transform_0, window_bounds = array<i64: 16, 16>}, {transform_indices = @transform_1, window_bounds = array<i64: 16, 16>}]} {
    %c0 = arith.constant 0 : index
    %c0_0 = arith.constant 0 : index
    %0 = vector.load %arg1[%c0, %c0_0] : memref<16x16xf32, #tpu.memory_space<vmem>>, vector<16x16xf32>
    %cst = arith.constant 0.000000e+00 : f32
    %1 = vector.broadcast %cst : f32 to vector<16x16xf32>
    %2 = arith.cmpf oeq, %0, %1 : vector<16x16xf32>
    %cst_1 = arith.constant 2.550000e+02 : f32
    %3 = vector.broadcast %cst_1 : f32 to vector<16x16xf32>
    %4 = arith.select %2, %0, %3 : vector<16x16xi1>, vector<16x16xf32>
    %c0_2 = arith.constant 0 : index
    %c0_3 = arith.constant 0 : index
    %5 = vector.load %arg2[%c0_2, %c0_3] : memref<16x16xf32, #tpu.memory_space<vmem>>, vector<16x16xf32>
    tpu.vector_store %arg2[%c0_2, %c0_3], %4 {strides = array<i32>} : memref<16x16xf32, #tpu.memory_space<vmem>>, vector<16x16xf32>,
    return
  }
  func.func @transform_0(%arg0: i32) -> (i32, i32) {
    %c0_i32 = arith.constant 0 : i32
    %c0_i32_0 = arith.constant 0 : i32
    return %arg0, %c0_i32 : i32, i32
  }
  func.func @transform_1(%arg0: i32) -> (i32, i32) {
    %c0_i32 = arith.constant 0 : i32
    %c0_i32_0 = arith.constant 0 : i32
    return %arg0, %c0_i32 : i32, i32
  }
}

</mosaic_0001>

<llo_original>
// kernel: tpu_custom_call.1
$region0: #{tpu_custom_call.1}
  #allocation0 [shape = 'u32[]', space=smem, size = 0x4, offset = 0x4, fixed_abs, tag = 'smem constant byte address 0x4 - core index']
  #allocation1 [shape = 'u32[144,128]{1,0:T(1,128)}', space=vmem, size = 0x12000, scoped, tag = 'internal scratch']
  %s0 = inlined_call_operand.vmem [shape: f32[32,16], index: 0, kind: input, shape index: {}, may-alias: {0,1}]
  %s1 = inlined_call_operand.vmem [shape: f32[32,16], index: 1, kind: output, shape index: {}, may-alias: {0,1}]
  %s2 = sld [smem:[#allocation0]]
  $region37: #{tpu_custom_call.1} parent=0
    _
  %s4 = ssub.s32 1, %s2
  %s5 = scalar_select 0, %s4, %s2
  loop: start=0, step=1, limit=4
  $region2: #{tpu_custom_call.1} parent=0 // loop_pre_header
    _
  $region3: #{tpu_custom_call.1} parent=0 // loop_header
    %s7 = sphi 0, %s11
    %p8 = scmp.ge.s32.totalorder %s7, 4
    %s17 = sphi 0, %s19
    %s20 = sphi 0, %s17
    %s21 = sphi 0, %s20
    %s37 = sphi 0, %s21
    %s43 = sphi 0, %s45
    %s46 = sphi 0, %s43
    %s47 = sphi 0, %s46
    %s63 = sphi 0, %s47
  $region4: #{tpu_custom_call.1} parent=0 // loop_header_branch
    %10 = sbr.rel (%p8) target = $region8
  $region5: #{tpu_custom_call.1} parent=0 // loop_body
    %s12 = ssub.s32 %s7, 1
    %s13 = ssub.s32 %s7, 2
    %s14 = sadd.s32 %s7, 1
    %s15 = ssub.s32 %s7, %s14
    %p16 = scmp.eq.s32.totalorder %s15, 0
    %s18 = sadd.s32 %s17, 1
    %s19 = scalar_select %p16, %s17, %s18
    %p22 = pneg %p16
    %p23 = scmp.eq.s32.totalorder %s7, 1
    %p24 = por %p22, %p23
    %p25 = scmp.ne.s32.totalorder %s17, %s20
    %p26 = scmp.eq.s32.totalorder %s7, 0
    %p27 = por %p25, %p26
    %p28 = scmp.ne.s32.totalorder %s17, %s20
    %p29 = scmp.eq.s32.totalorder %s12, 1
    %p30 = por %p28, %p29
    %p31 = scmp.ne.s32.totalorder %s20, %s21
    %p32 = scmp.eq.s32.totalorder %s12, 0
    %p33 = por %p31, %p32
    %p34 = scmp.ne.s32.totalorder %s20, %s21
    %p35 = scmp.eq.s32.totalorder %s13, 1
    %p36 = por %p34, %p35
    %p38 = scmp.ne.s32.totalorder %s21, %s37
    %p39 = scmp.eq.s32.totalorder %s13, 0
    %p40 = por %p38, %p39
    %s41 = ssub.s32 %s7, %s14
    %p42 = scmp.eq.s32.totalorder %s41, 0
    %s44 = sadd.s32 %s43, 1
    %s45 = scalar_select %p42, %s43, %s44
    %p48 = pneg %p42
    %p49 = scmp.eq.s32.totalorder %s7, 1
    %p50 = por %p48, %p49
    %p51 = scmp.ne.s32.totalorder %s43, %s46
    %p52 = scmp.eq.s32.totalorder %s7, 0
    %p53 = por %p51, %p52
    %p54 = scmp.ne.s32.totalorder %s43, %s46
    %p55 = scmp.eq.s32.totalorder %s12, 1
    %p56 = por %p54, %p55
    %p57 = scmp.ne.s32.totalorder %s46, %s47
    %p58 = scmp.eq.s32.totalorder %s12, 0
    %p59 = por %p57, %p58
    %p60 = scmp.ne.s32.totalorder %s46, %s47
    %p61 = scmp.eq.s32.totalorder %s13, 1
    %p62 = por %p60, %p61
    %p64 = scmp.ne.s32.totalorder %s47, %s63
    %p65 = scmp.eq.s32.totalorder %s13, 0
    %p66 = por %p64, %p65
    %p67 = scmp.le.s32.totalorder 1, %s7
    %p68 = scmp.lt.s32.totalorder %s7, 3
    %p69 = pnand %p67, %p68
    %p70 = pneg %p69
    // Predicated region
    $region9: #{tpu_custom_call.1} parent=5 // pred_check
      _
    $region10: #{tpu_custom_call.1} parent=5 // pred_check_branch
      %72 = sbr.rel (%p69) target = $region12
    $region11: #{tpu_custom_call.1} parent=5 // pred_region
      %s73 = ssub.s32 %s7, 1
    $region12: #{tpu_custom_call.1} parent=5 // pred_fallthru
      _
    %p74 = scmp.lt.s32.totalorder %s7, 2
    // Predicated region
    $region13: #{tpu_custom_call.1} parent=5 // pred_check
      %p75 = pneg %p74
    $region14: #{tpu_custom_call.1} parent=5 // pred_check_branch
      %77 = sbr.rel (%p75) target = $region16
    $region15: #{tpu_custom_call.1} parent=5 // pred_region
      // Predicated region
      $region17: #{tpu_custom_call.1} parent=15 // pred_check
        %p78 = pneg %p27
      $region18: #{tpu_custom_call.1} parent=15 // pred_check_branch
        %80 = sbr.rel (%p78) target = $region20
      $region19: #{tpu_custom_call.1} parent=15 // pred_region
        %s81 = smul.u32 2, %s7
        %p82 = scmp.lt.s32.totalorder %s81, 3
        %s83 = scalar_select %p82, %s81, 3
        %s84 = smul.addr %s83, 8
        %s85 = scalar_lea.vmem %s0, %s84
        %s86 = smul.u32 2, %s7
      $region20: #{tpu_custom_call.1} parent=15 // pred_fallthru
        _
    $region16: #{tpu_custom_call.1} parent=5 // pred_fallthru
      _
    %p87 = scmp.le.s32.totalorder 1, %s7
    %p88 = scmp.lt.s32.totalorder %s7, 3
    %p89 = pnand %p87, %p88
    %p90 = pneg %p89
    // Predicated region
    $region21: #{tpu_custom_call.1} parent=5 // pred_check
      _
    $region22: #{tpu_custom_call.1} parent=5 // pred_check_branch
      %92 = sbr.rel (%p89) target = $region24
    $region23: #{tpu_custom_call.1} parent=5 // pred_region
      %s93 = ssub.s32 %s7, 1
      %s94 = smul.u32 2, %s12
      %p95 = scmp.lt.s32.totalorder %s94, 3
      %s96 = scalar_select %p95, %s94, 3
      %s97 = smul.addr %s96, 8
      %s98 = scalar_lea.vmem %s0, %s97
      %p99 = pneg %p33
      %p100 = pneg %p30
      %p101 = pneg %p59
      %p102 = pneg %p56
      %s103 = smul.u32 2, %s12
      %p104 = scmp.lt.s32.totalorder %s103, 3
      %s105 = scalar_select %p104, %s103, 3
      %s106 = smul.addr %s105, 8
      %s107 = scalar_lea.vmem %s1, %s106
      %s108 = smul.u32 2, %s12
      %p109 = scmp.lt.s32.totalorder %s108, 3
      %s110 = scalar_select %p109, %s108, 3
      %s111 = smul.addr %s110, 8
      %s112 = scalar_lea.vmem %s0, %s111
      %s113 = smul.u32 2, %s12
      %s114 = smul.u32 2, %s12
      %p115 = scmp.lt.s32.totalorder %s114, 3
      %s116 = scalar_select %p115, %s114, 3
      %s117 = smul.addr %s116, 8
      %s118 = scalar_lea.vmem %s1, %s117
      %s119 = smul.u32 2, %s12
      %v120 = vld [vmem:[%s112] sm:$0xff]
      %v121 = vld [vmem:[%s112 + $0x8] sm:$0xff]
      %vm122 = vcmp.eq.f32.partialorder %v120, 0.0
      %vm123 = vcmp.eq.f32.partialorder %v121, 0.0
      %v124 = vsel %vm122, %v120, 255.0
      %v125 = vsel %vm123, %v121, 255.0
      %vm126 = vcmask 130048
      %127 = vst.msk [vmem:[%s118] sm:$0xff] %vm126, %v124
      %128 = vst.msk [vmem:[%s118 + $0x8] sm:$0xff] %vm126, %v125
      %s129 = smul.u32 2, %s12
      %p130 = scmp.lt.s32.totalorder %s129, 3
      %s131 = scalar_select %p130, %s129, 3
      %s132 = smul.addr %s131, 8
      %s133 = scalar_lea.vmem %s1, %s132
      // Predicated region
      $region25: #{tpu_custom_call.1} parent=23 // pred_check
        %p134 = pneg %p56
      $region26: #{tpu_custom_call.1} parent=23 // pred_check_branch
        %136 = sbr.rel (%p134) target = $region28
      $region27: #{tpu_custom_call.1} parent=23 // pred_region
        %s137 = smul.u32 2, %s12
      $region28: #{tpu_custom_call.1} parent=23 // pred_fallthru
        _
    $region24: #{tpu_custom_call.1} parent=5 // pred_fallthru
      _
    %p138 = scmp.le.s32.totalorder 2, %s7
    // Predicated region
    $region29: #{tpu_custom_call.1} parent=5 // pred_check
      %p139 = pneg %p138
    $region30: #{tpu_custom_call.1} parent=5 // pred_check_branch
      %141 = sbr.rel (%p139) target = $region32
    $region31: #{tpu_custom_call.1} parent=5 // pred_region
      %s142 = ssub.s32 %s7, 2
      // Predicated region
      $region33: #{tpu_custom_call.1} parent=31 // pred_check
        %p143 = pneg %p62
      $region34: #{tpu_custom_call.1} parent=31 // pred_check_branch
        %145 = sbr.rel (%p143) target = $region36
      $region35: #{tpu_custom_call.1} parent=31 // pred_region
        %s146 = smul.u32 2, %s13
        %p147 = scmp.lt.s32.totalorder %s146, 3
        %s148 = scalar_select %p147, %s146, 3
        %s149 = smul.addr %s148, 8
        %s150 = scalar_lea.vmem %s1, %s149
      $region36: #{tpu_custom_call.1} parent=31 // pred_fallthru
        _
    $region32: #{tpu_custom_call.1} parent=5 // pred_fallthru
      _
  $region6: #{tpu_custom_call.1} parent=0 // loop_footer
    %s11 = sadd.s32 1, %s7
  $region7: #{tpu_custom_call.1} parent=0 // loop_footer_branch
    %6 = sbr.rel target = $region3
  $region8: #{tpu_custom_call.1} parent=0 // loop_exit
    _

</llo_original>
